<compile_context>
chip_gen: v7x
topology: tpu7x:2x2x1
jax: 0.10.0
libtpu: 0.0.40
codegen_flags: <defaults>
</compile_context>

<pallas_src>
import jax
import jax.numpy as jnp
from jax import lax
from jax.experimental import pallas as pl
from jax.experimental.pallas import tpu as pltpu


def _fused_kernel(x_ref, w1b1_ref, w2_ref, b2_ref, sim_ref, w3_ref, b3_ref,
                  yhat_ref, out_ref):
    BB, C, HW = yhat_ref.shape            # batch items handled by this grid step
    Wblk = x_ref.shape[1]                 # == BB * HW (batch-major columns)
    assert Wblk == BB * HW

    # ---------------- stage 1 (MXU): 1x1 conv C->D (+bias), ReLU, 1x1 conv D->C.
    # x_ref carries a trailing ones-row, so the first conv bias rides in the dot.
    h = jnp.dot(w1b1_ref[...], x_ref[...], preferred_element_type=jnp.float32)
    h = jnp.maximum(h, 0.0)                                           # (D, Wblk)
    y = jnp.dot(w2_ref[...], h, preferred_element_type=jnp.float32) + b2_ref[...]
    # y == Y_hat for all batch items of this step, lane-dense (C, Wblk).

    for bb in range(BB):                  # tiny static loop, 128-aligned slices
        yhat_ref[bb] = y[:, bb * HW:(bb + 1) * HW]

    # ---------------- stage 2 (VPU + XLU): torch  Y_hat.view(B, HW, C) @ sim.
    # Raw-memory semantics: with per-batch flat index m = c*HW + p and j = m % C,
    #   z_flat[m] = sum_k y_flat[m - j + k] * sim[k, j]
    #             = sum_{d=-(C-1)}^{C-1} coef_d[m] * y_flat[m + d],
    #   coef_d[m] = sim[j + d, j] if 0 <= j + d < C else 0.
    # Taps that run off a batch's flat vector always have coef == 0, so wrapped
    # and neighbouring-batch garbage introduced by the rolls is harmless.
    col = lax.broadcasted_iota(jnp.int32, (C, Wblk), 1)
    row = lax.broadcasted_iota(jnp.int32, (C, Wblk), 0)
    p_loc = col % HW                       # per-batch pixel index (HW is 2^k)
    jmod = (row * HW + p_loc) % C          # j at flat position m = c*HW + p

    # Rows shifted by one channel (flat continuation across HW-row boundaries);
    # the wrapped row is only ever multiplied by zero coefficients.
    if C > 1:
        y_next = jnp.concatenate([y[1:], y[:1]], axis=0)    # y_next[c] = y[c+1]
        y_prev = jnp.concatenate([y[-1:], y[:-1]], axis=0)  # y_prev[c] = y[c-1]

    def lane_roll(v, shift):               # v[c, P] -> v[c, (P - shift) mod Wblk]
        shift = shift % Wblk
        if shift == 0:
            return v
        return pltpu.roll(v, shift=shift, axis=1)

    z = jnp.zeros((C, Wblk), jnp.float32)
    for d in range(-(C - 1), C):
        # coefficient slab for this tap, built from SMEM scalars and consumed
        # immediately (keeps live-vreg pressure low).
        coef = jnp.zeros((C, Wblk), jnp.float32)
        for j in range(C):
            k = j + d
            if 0 <= k < C:
                coef = jnp.where(jmod == j, sim_ref[k, j], coef)
        if d == 0:
            tap = y
        elif d > 0:
            tap = jnp.where(p_loc >= HW - d,
                            lane_roll(y_next, HW - d),   # crosses into channel c+1
                            lane_roll(y, -d))            # stays inside the row
        else:
            tap = jnp.where(p_loc < -d,
                            lane_roll(y_prev, -d - HW),  # crosses into channel c-1
                            lane_roll(y, -d))
        z = z + coef * tap

    # ---------------- stage 3 (MXU): output 1x1 conv C->O, one lane-dense store.
    rows = jnp.dot(w3_ref[...], z, preferred_element_type=jnp.float32) + b3_ref[...]
    out_ref[...] = rows                    # (O, Wblk), single unmasked store


def _prefers_batch_grid():
    """Parallel batch grid only pays off on multi-TensorCore chips (v7x)."""
    try:
        kind = jax.devices()[0].device_kind.lower()
    except Exception:
        return False
    return ("v7" in kind) or ("7x" in kind)


def inverse_imaging_forward(y_tilde, params, batch_grid=None):
    """y_tilde: (B, C, H, W) float32 NCHW.  Returns (output, Y_hat) with
    output (B, H, 3, W) = torch permute(0, 2, 1, 3) and Y_hat (B, C, H, W)."""
    B, C, H, W = y_tilde.shape
    HW = H * W
    w1, b1, w2, b2, sim, w3, b3 = params
    # w1: (D, C)  b1: (D,)   -- conv_layer (1x1)
    # w2: (C, D)  b2: (C,)   -- fc_layer   (1x1)
    # sim: (C, C)            -- similarity_matrix
    # w3: (3, C)  b3: (3,)   -- output_layer (1x1)
    D = w1.shape[0]
    O = w3.shape[0]

    if batch_grid is None:
        batch_grid = _prefers_batch_grid()
    num_blocks = B if batch_grid else 1     # v7x: one batch item per TC
    BB = B // num_blocks
    Wblk = BB * HW

    # Lane-dense batch-major activation slab (C, B*HW); the trailing ones row
    # folds the first conv bias into the stage-1 matmul (one fewer input DMA).
    x = y_tilde.reshape(B, C, HW).transpose(1, 0, 2).reshape(C, B * HW)
    x_aug = jnp.concatenate([x, jnp.ones((1, B * HW), x.dtype)], axis=0)
    w1b1 = jnp.concatenate([w1, b1[:, None]], axis=1)             # (D, C+1)

    smem = pl.BlockSpec(memory_space=pltpu.MemorySpace.SMEM)

    yhat, out_flat = pl.pallas_call(
        _fused_kernel,
        out_shape=(jax.ShapeDtypeStruct((B, C, HW), jnp.float32),
                   jax.ShapeDtypeStruct((O, B * HW), jnp.float32)),
        grid_spec=pltpu.PrefetchScalarGridSpec(
            num_scalar_prefetch=0,
            grid=(num_blocks,),
            in_specs=[
                pl.BlockSpec((C + 1, Wblk), lambda nb: (0, nb)),   # activations
                pl.BlockSpec((D, C + 1), lambda nb: (0, 0)),       # [w1 | b1]
                pl.BlockSpec((C, D), lambda nb: (0, 0)),           # w2
                pl.BlockSpec((C, 1), lambda nb: (0, 0)),           # b2
                smem,                                              # sim (scalars)
                pl.BlockSpec((O, C), lambda nb: (0, 0)),           # w3
                pl.BlockSpec((O, 1), lambda nb: (0, 0)),           # b3
            ],
            out_specs=(
                pl.BlockSpec((BB, C, HW), lambda nb: (nb, 0, 0)),  # Y_hat
                pl.BlockSpec((O, Wblk), lambda nb: (0, nb)),       # conv3 output
            ),
        ),
        compiler_params=pltpu.CompilerParams(
            dimension_semantics=("parallel",)),
    )(x_aug, w1b1, w2, b2.reshape(C, 1), sim, w3, b3.reshape(O, 1))

    y_hat = yhat.reshape(B, C, H, W)
    # torch: output_layer(...).permute(0, 2, 1, 3) -> (B, H, 3, W); one tiny
    # (~6 KB) XLA transpose is the only remaining glue.
    output = out_flat.reshape(O, B, H, W).transpose(1, 2, 0, 3)
    return output, y_hat


# ---------------- pure-JAX reference (for correctness check) ----------------

def reference_forward(y_tilde, params):
    B, C, H, W = y_tilde.shape
    w1, b1, w2, b2, sim, w3, b3 = params
    hp = jax.lax.Precision.HIGHEST
    h = jnp.einsum('dc,bchw->bdhw', w1, y_tilde, precision=hp) + b1[None, :, None, None]
    h = jnp.maximum(h, 0.0)
    y_hat = jnp.einsum('cd,bdhw->bchw', w2, h, precision=hp) + b2[None, :, None, None]
    z = jnp.matmul(y_hat.reshape(B, H * W, C), sim, precision=hp)  # torch .view semantics
    t = z.reshape(B, C, H, W)
    out = jnp.einsum('oc,bchw->bohw', w3, t, precision=hp) + b3[None, :, None, None]
    return jnp.transpose(out, (0, 2, 1, 3)), y_hat


if __name__ == "__main__":
    # Small shapes consistent with the module: C=3, D=64, spatial=16, batch=2.
    B, C, D, H, W = 2, 3, 64, 16, 16

    key = jax.random.PRNGKey(0)
    ks = jax.random.split(key, 8)
    y_tilde = jax.random.normal(ks[0], (B, C, H, W), jnp.float32)

    w1 = jax.random.normal(ks[1], (D, C), jnp.float32) * 0.1   # conv_layer.weight (D,C,1,1)
    b1 = jax.random.normal(ks[2], (D,), jnp.float32) * 0.1
    w2 = jax.random.normal(ks[3], (C, D), jnp.float32) * 0.1   # fc_layer.weight (C,D,1,1)
    b2 = jax.random.normal(ks[4], (C,), jnp.float32) * 0.1
    sim = jax.random.normal(ks[5], (C, C), jnp.float32)        # similarity_matrix
    w3 = jax.random.normal(ks[6], (3, C), jnp.float32) * 0.1   # output_layer.weight (3,C,1,1)
    b3 = jax.random.normal(ks[7], (3,), jnp.float32) * 0.1
    params = (w1, b1, w2, b2, sim, w3, b3)

    fwd = jax.jit(inverse_imaging_forward, static_argnames=("batch_grid",))
    ref_out, ref_y_hat = reference_forward(y_tilde, params)

    # Auto-selected path (single fused step on v5e/v6e, parallel batch grid on v7x).
    out, y_hat = fwd(y_tilde, params)
    jax.block_until_ready((out, y_hat))
    assert out.shape == (B, H, 3, W), out.shape
    assert y_hat.shape == (B, C, H, W), y_hat.shape
    assert jnp.allclose(out, ref_out, atol=5e-4, rtol=5e-4)
    assert jnp.allclose(y_hat, ref_y_hat, atol=5e-4, rtol=5e-4)

    # Also exercise the explicit per-batch parallel grid (the v7x 2-TC path).
    out_g, y_hat_g = fwd(y_tilde, params, batch_grid=True)
    jax.block_until_ready((out_g, y_hat_g))
    assert jnp.allclose(out_g, ref_out, atol=5e-4, rtol=5e-4)
    assert jnp.allclose(y_hat_g, ref_y_hat, atol=5e-4, rtol=5e-4)

    print("KERNEL_OK")
</pallas_src>

<mosaic_0001>
module attributes {stable_mosaic.version = 11 : i64} {
  func.func @_fused_kernel(%arg0: i32, %arg1: memref<4x512xf32, #tpu.memory_space<vmem>>, %arg2: memref<64x4xf32, #tpu.memory_space<vmem>>, %arg3: memref<3x64xf32, #tpu.memory_space<vmem>>, %arg4: memref<3x1xf32, #tpu.memory_space<vmem>>, %arg5: memref<3x3xf32, #tpu.memory_space<smem>>, %arg6: memref<3x3xf32, #tpu.memory_space<vmem>>, %arg7: memref<3x1xf32, #tpu.memory_space<vmem>>, %arg8: memref<2x3x256xf32, #tpu.memory_space<vmem>>, %arg9: memref<3x512xf32, #tpu.memory_space<vmem>>) attributes {dimension_semantics = [#tpu.dimension_semantics<parallel>], iteration_bounds = array<i64: 1>, scalar_prefetch = 0 : i64, scratch_operands = 0 : i64, tpu.core_type = #tpu.core_type<tc>, window_params = [{transform_indices = @transform_0, window_bounds = array<i64: 4, 512>}, {pipeline_mode = #tpu.pipeline_mode<synchronous>, transform_indices = @transform_1, window_bounds = array<i64: 64, 4>}, {pipeline_mode = #tpu.pipeline_mode<synchronous>, transform_indices = @transform_2, window_bounds = array<i64: 3, 64>}, {pipeline_mode = #tpu.pipeline_mode<synchronous>, transform_indices = @transform_3, window_bounds = array<i64: 3, 1>}, {transform_indices = @transform_4, window_bounds = array<i64: 3, 3>}, {pipeline_mode = #tpu.pipeline_mode<synchronous>, transform_indices = @transform_5, window_bounds = array<i64: 3, 3>}, {pipeline_mode = #tpu.pipeline_mode<synchronous>, transform_indices = @transform_6, window_bounds = array<i64: 3, 1>}, {transform_indices = @transform_7, window_bounds = array<i64: 2, 3, 256>}, {transform_indices = @transform_8, window_bounds = array<i64: 3, 512>}]} {
    %c0 = arith.constant 0 : index
    %c0_0 = arith.constant 0 : index
    %0 = vector.load %arg2[%c0, %c0_0] : memref<64x4xf32, #tpu.memory_space<vmem>>, vector<64x4xf32>
    %c0_1 = arith.constant 0 : index
    %c0_2 = arith.constant 0 : index
    %1 = vector.load %arg1[%c0_1, %c0_2] : memref<4x512xf32, #tpu.memory_space<vmem>>, vector<4x512xf32>
    %cst = arith.constant dense<0.000000e+00> : vector<64x512xf32>
    %2 = tpu.matmul %0, %1, %cst {dimension_numbers = #tpu.dot_dimension_numbers<[1], [0], [0], [1], [0, 0, 1, 1], [], []>} : vector<64x4xf32>, vector<4x512xf32>, vector<64x512xf32> -> vector<64x512xf32>
    %cst_3 = arith.constant 0.000000e+00 : f32
    %3 = vector.broadcast %cst_3 : f32 to vector<64x512xf32>
    %4 = arith.maximumf %2, %3 : vector<64x512xf32>
    %c0_4 = arith.constant 0 : index
    %c0_5 = arith.constant 0 : index
    %5 = vector.load %arg3[%c0_4, %c0_5] : memref<3x64xf32, #tpu.memory_space<vmem>>, vector<3x64xf32>
    %cst_6 = arith.constant dense<0.000000e+00> : vector<3x512xf32>
    %6 = tpu.matmul %5, %4, %cst_6 {dimension_numbers = #tpu.dot_dimension_numbers<[1], [0], [0], [1], [0, 0, 1, 1], [], []>} : vector<3x64xf32>, vector<64x512xf32>, vector<3x512xf32> -> vector<3x512xf32>
    %c0_7 = arith.constant 0 : index
    %c0_8 = arith.constant 0 : index
    %7 = vector.load %arg4[%c0_7, %c0_8] : memref<3x1xf32, #tpu.memory_space<vmem>>, vector<3x1xf32>
    %8 = vector.broadcast %7 : vector<3x1xf32> to vector<3x512xf32>
    %9 = arith.addf %6, %8 : vector<3x512xf32>
    %10 = vector.extract_strided_slice %9 {offsets = [0, 0], sizes = [3, 256], strides = [1, 1]} : vector<3x512xf32> to vector<3x256xf32>
    %c0_9 = arith.constant 0 : index
    %c0_10 = arith.constant 0 : index
    %c0_11 = arith.constant 0 : index
    %11 = vector.load %arg8[%c0_9, %c0_10, %c0_11] : memref<2x3x256xf32, #tpu.memory_space<vmem>>, vector<1x3x256xf32>
    %12 = vector.shape_cast %11 : vector<1x3x256xf32> to vector<3x256xf32>
    %13 = vector.shape_cast %10 : vector<3x256xf32> to vector<1x3x256xf32>
    tpu.vector_store %arg8[%c0_9, %c0_10, %c0_11], %13 {strides = array<i32>} : memref<2x3x256xf32, #tpu.memory_space<vmem>>, vector<1x3x256xf32>,
    %14 = vector.extract_strided_slice %9 {offsets = [0, 256], sizes = [3, 256], strides = [1, 1]} : vector<3x512xf32> to vector<3x256xf32>
    %c1 = arith.constant 1 : index
    %c0_12 = arith.constant 0 : index
    %c0_13 = arith.constant 0 : index
    %15 = vector.load %arg8[%c1, %c0_12, %c0_13] : memref<2x3x256xf32, #tpu.memory_space<vmem>>, vector<1x3x256xf32>
    %16 = vector.shape_cast %15 : vector<1x3x256xf32> to vector<3x256xf32>
    %17 = vector.shape_cast %14 : vector<3x256xf32> to vector<1x3x256xf32>
    tpu.vector_store %arg8[%c1, %c0_12, %c0_13], %17 {strides = array<i32>} : memref<2x3x256xf32, #tpu.memory_space<vmem>>, vector<1x3x256xf32>,
    %18 = tpu.iota {dimensions = array<i32: 1>} : vector<3x512xi32>
    %19 = tpu.iota {dimensions = array<i32: 0>} : vector<3x512xi32>
    %c256_i32 = arith.constant 256 : i32
    %c0_i32 = arith.constant 0 : i32
    %20 = arith.cmpi eq, %c256_i32, %c0_i32 : i32
    %c1_i32 = arith.constant 1 : i32
    %21 = arith.select %20, %c1_i32, %c256_i32 : i32
    %22 = vector.broadcast %21 : i32 to vector<3x512xi32>
    %23 = arith.remsi %18, %22 : vector<3x512xi32>
    %c0_i32_14 = arith.constant 0 : i32
    %24 = vector.broadcast %c0_i32_14 : i32 to vector<3x512xi32>
    %25 = arith.cmpi ne, %23, %24 : vector<3x512xi32>
    %c0_i32_15 = arith.constant 0 : i32
    %26 = vector.broadcast %c0_i32_15 : i32 to vector<3x512xi32>
    %27 = arith.cmpi slt, %23, %26 : vector<3x512xi32>
    %c0_i32_16 = arith.constant 0 : i32
    %28 = arith.cmpi slt, %21, %c0_i32_16 : i32
    %29 = vector.broadcast %28 : i1 to vector<3x512xi1>
    %30 = vector.broadcast %29 : vector<3x512xi1> to vector<3x512xi1>
    %31 = arith.xori %27, %30 : vector<3x512xi1>
    %32 = arith.andi %31, %25 : vector<3x512xi1>
    %33 = vector.broadcast %21 : i32 to vector<3x512xi32>
    %34 = arith.addi %23, %33 : vector<3x512xi32>
    %35 = arith.select %32, %34, %23 : vector<3x512xi1>, vector<3x512xi32>
    %c256_i32_17 = arith.constant 256 : i32
    %36 = vector.broadcast %c256_i32_17 : i32 to vector<3x512xi32>
    %37 = arith.muli %19, %36 : vector<3x512xi32>
    %38 = arith.addi %37, %35 : vector<3x512xi32>
    %c3_i32 = arith.constant 3 : i32
    %c0_i32_18 = arith.constant 0 : i32
    %39 = arith.cmpi eq, %c3_i32, %c0_i32_18 : i32
    %c1_i32_19 = arith.constant 1 : i32
    %40 = arith.select %39, %c1_i32_19, %c3_i32 : i32
    %41 = vector.broadcast %40 : i32 to vector<3x512xi32>
    %42 = arith.remsi %38, %41 : vector<3x512xi32>
    %c0_i32_20 = arith.constant 0 : i32
    %43 = vector.broadcast %c0_i32_20 : i32 to vector<3x512xi32>
    %44 = arith.cmpi ne, %42, %43 : vector<3x512xi32>
    %c0_i32_21 = arith.constant 0 : i32
    %45 = vector.broadcast %c0_i32_21 : i32 to vector<3x512xi32>
    %46 = arith.cmpi slt, %42, %45 : vector<3x512xi32>
    %c0_i32_22 = arith.constant 0 : i32
    %47 = arith.cmpi slt, %40, %c0_i32_22 : i32
    %48 = vector.broadcast %47 : i1 to vector<3x512xi1>
    %49 = vector.broadcast %48 : vector<3x512xi1> to vector<3x512xi1>
    %50 = arith.xori %46, %49 : vector<3x512xi1>
    %51 = arith.andi %50, %44 : vector<3x512xi1>
    %52 = vector.broadcast %40 : i32 to vector<3x512xi32>
    %53 = arith.addi %42, %52 : vector<3x512xi32>
    %54 = arith.select %51, %53, %42 : vector<3x512xi1>, vector<3x512xi32>
    %55 = vector.extract_strided_slice %9 {offsets = [1, 0], sizes = [2, 512], strides = [1, 1]} : vector<3x512xf32> to vector<2x512xf32>
    %56 = vector.extract_strided_slice %9 {offsets = [0, 0], sizes = [1, 512], strides = [1, 1]} : vector<3x512xf32> to vector<1x512xf32>
    %57 = tpu.concatenate %55, %56 in 0 : vector<2x512xf32>, vector<1x512xf32> -> vector<3x512xf32>
    %58 = vector.extract_strided_slice %9 {offsets = [2, 0], sizes = [1, 512], strides = [1, 1]} : vector<3x512xf32> to vector<1x512xf32>
    %59 = vector.extract_strided_slice %9 {offsets = [0, 0], sizes = [2, 512], strides = [1, 1]} : vector<3x512xf32> to vector<2x512xf32>
    %60 = tpu.concatenate %58, %59 in 0 : vector<1x512xf32>, vector<2x512xf32> -> vector<3x512xf32>
    %cst_23 = arith.constant 0.000000e+00 : f32
    %61 = vector.broadcast %cst_23 : f32 to vector<3x512xf32>
    %cst_24 = arith.constant 0.000000e+00 : f32
    %62 = vector.broadcast %cst_24 : f32 to vector<3x512xf32>
    %c2_i32 = arith.constant 2 : i32
    %63 = vector.broadcast %c2_i32 : i32 to vector<3x512xi32>
    %64 = arith.cmpi eq, %54, %63 : vector<3x512xi32>
    %c0_25 = arith.constant 0 : index
    %c2 = arith.constant 2 : index
    %65 = memref.load %arg5[%c0_25, %c2] : memref<3x3xf32, #tpu.memory_space<smem>>
    %66 = vector.broadcast %65 : f32 to vector<3x512xf32>
    %67 = arith.select %64, %66, %62 : vector<3x512xi1>, vector<3x512xf32>
    %c2_i32_26 = arith.constant 2 : i32
    %68 = vector.broadcast %c2_i32_26 : i32 to vector<3x512xi32>
    %69 = arith.cmpi slt, %35, %68 : vector<3x512xi32>
    %c258_i32 = arith.constant 258 : i32
    %70 = tpu.dynamic_rotate %60 by %c258_i32 dim 1 : vector<3x512xf32>, i32 -> vector<3x512xf32>
    %c2_i32_27 = arith.constant 2 : i32
    %71 = tpu.dynamic_rotate %9 by %c2_i32_27 dim 1 : vector<3x512xf32>, i32 -> vector<3x512xf32>
    %72 = arith.select %69, %70, %71 : vector<3x512xi1>, vector<3x512xf32>
    %73 = arith.mulf %67, %72 : vector<3x512xf32>
    %74 = arith.addf %61, %73 : vector<3x512xf32>
    %cst_28 = arith.constant 0.000000e+00 : f32
    %75 = vector.broadcast %cst_28 : f32 to vector<3x512xf32>
    %c1_i32_29 = arith.constant 1 : i32
    %76 = vector.broadcast %c1_i32_29 : i32 to vector<3x512xi32>
    %77 = arith.cmpi eq, %54, %76 : vector<3x512xi32>
    %c0_30 = arith.constant 0 : index
    %c1_31 = arith.constant 1 : index
    %78 = memref.load %arg5[%c0_30, %c1_31] : memref<3x3xf32, #tpu.memory_space<smem>>
    %79 = vector.broadcast %78 : f32 to vector<3x512xf32>
    %80 = arith.select %77, %79, %75 : vector<3x512xi1>, vector<3x512xf32>
    %c2_i32_32 = arith.constant 2 : i32
    %81 = vector.broadcast %c2_i32_32 : i32 to vector<3x512xi32>
    %82 = arith.cmpi eq, %54, %81 : vector<3x512xi32>
    %c1_33 = arith.constant 1 : index
    %c2_34 = arith.constant 2 : index
    %83 = memref.load %arg5[%c1_33, %c2_34] : memref<3x3xf32, #tpu.memory_space<smem>>
    %84 = vector.broadcast %83 : f32 to vector<3x512xf32>
    %85 = arith.select %82, %84, %80 : vector<3x512xi1>, vector<3x512xf32>
    %c1_i32_35 = arith.constant 1 : i32
    %86 = vector.broadcast %c1_i32_35 : i32 to vector<3x512xi32>
    %87 = arith.cmpi slt, %35, %86 : vector<3x512xi32>
    %c257_i32 = arith.constant 257 : i32
    %88 = tpu.dynamic_rotate %60 by %c257_i32 dim 1 : vector<3x512xf32>, i32 -> vector<3x512xf32>
    %c1_i32_36 = arith.constant 1 : i32
    %89 = tpu.dynamic_rotate %9 by %c1_i32_36 dim 1 : vector<3x512xf32>, i32 -> vector<3x512xf32>
    %90 = arith.select %87, %88, %89 : vector<3x512xi1>, vector<3x512xf32>
    %91 = arith.mulf %85, %90 : vector<3x512xf32>
    %92 = arith.addf %74, %91 : vector<3x512xf32>
    %cst_37 = arith.constant 0.000000e+00 : f32
    %93 = vector.broadcast %cst_37 : f32 to vector<3x512xf32>
    %c0_i32_38 = arith.constant 0 : i32
    %94 = vector.broadcast %c0_i32_38 : i32 to vector<3x512xi32>
    %95 = arith.cmpi eq, %54, %94 : vector<3x512xi32>
    %c0_39 = arith.constant 0 : index
    %c0_40 = arith.constant 0 : index
    %96 = memref.load %arg5[%c0_39, %c0_40] : memref<3x3xf32, #tpu.memory_space<smem>>
    %97 = vector.broadcast %96 : f32 to vector<3x512xf32>
    %98 = arith.select %95, %97, %93 : vector<3x512xi1>, vector<3x512xf32>
    %c1_i32_41 = arith.constant 1 : i32
    %99 = vector.broadcast %c1_i32_41 : i32 to vector<3x512xi32>
    %100 = arith.cmpi eq, %54, %99 : vector<3x512xi32>
    %c1_42 = arith.constant 1 : index
    %c1_43 = arith.constant 1 : index
    %101 = memref.load %arg5[%c1_42, %c1_43] : memref<3x3xf32, #tpu.memory_space<smem>>
    %102 = vector.broadcast %101 : f32 to vector<3x512xf32>
    %103 = arith.select %100, %102, %98 : vector<3x512xi1>, vector<3x512xf32>
    %c2_i32_44 = arith.constant 2 : i32
    %104 = vector.broadcast %c2_i32_44 : i32 to vector<3x512xi32>
    %105 = arith.cmpi eq, %54, %104 : vector<3x512xi32>
    %c2_45 = arith.constant 2 : index
    %c2_46 = arith.constant 2 : index
    %106 = memref.load %arg5[%c2_45, %c2_46] : memref<3x3xf32, #tpu.memory_space<smem>>
    %107 = vector.broadcast %106 : f32 to vector<3x512xf32>
    %108 = arith.select %105, %107, %103 : vector<3x512xi1>, vector<3x512xf32>
    %109 = arith.mulf %108, %9 : vector<3x512xf32>
    %110 = arith.addf %92, %109 : vector<3x512xf32>
    %cst_47 = arith.constant 0.000000e+00 : f32
    %111 = vector.broadcast %cst_47 : f32 to vector<3x512xf32>
    %c0_i32_48 = arith.constant 0 : i32
    %112 = vector.broadcast %c0_i32_48 : i32 to vector<3x512xi32>
    %113 = arith.cmpi eq, %54, %112 : vector<3x512xi32>
    %c1_49 = arith.constant 1 : index
    %c0_50 = arith.constant 0 : index
    %114 = memref.load %arg5[%c1_49, %c0_50] : memref<3x3xf32, #tpu.memory_space<smem>>
    %115 = vector.broadcast %114 : f32 to vector<3x512xf32>
    %116 = arith.select %113, %115, %111 : vector<3x512xi1>, vector<3x512xf32>
    %c1_i32_51 = arith.constant 1 : i32
    %117 = vector.broadcast %c1_i32_51 : i32 to vector<3x512xi32>
    %118 = arith.cmpi eq, %54, %117 : vector<3x512xi32>
    %c2_52 = arith.constant 2 : index
    %c1_53 = arith.constant 1 : index
    %119 = memref.load %arg5[%c2_52, %c1_53] : memref<3x3xf32, #tpu.memory_space<smem>>
    %120 = vector.broadcast %119 : f32 to vector<3x512xf32>
    %121 = arith.select %118, %120, %116 : vector<3x512xi1>, vector<3x512xf32>
    %c255_i32 = arith.constant 255 : i32
    %122 = vector.broadcast %c255_i32 : i32 to vector<3x512xi32>
    %123 = arith.cmpi sge, %35, %122 : vector<3x512xi32>
    %c255_i32_54 = arith.constant 255 : i32
    %124 = tpu.dynamic_rotate %57 by %c255_i32_54 dim 1 : vector<3x512xf32>, i32 -> vector<3x512xf32>
    %c511_i32 = arith.constant 511 : i32
    %125 = tpu.dynamic_rotate %9 by %c511_i32 dim 1 : vector<3x512xf32>, i32 -> vector<3x512xf32>
    %126 = arith.select %123, %124, %125 : vector<3x512xi1>, vector<3x512xf32>
    %127 = arith.mulf %121, %126 : vector<3x512xf32>
    %128 = arith.addf %110, %127 : vector<3x512xf32>
    %cst_55 = arith.constant 0.000000e+00 : f32
    %129 = vector.broadcast %cst_55 : f32 to vector<3x512xf32>
    %c0_i32_56 = arith.constant 0 : i32
    %130 = vector.broadcast %c0_i32_56 : i32 to vector<3x512xi32>
    %131 = arith.cmpi eq, %54, %130 : vector<3x512xi32>
    %c2_57 = arith.constant 2 : index
    %c0_58 = arith.constant 0 : index
    %132 = memref.load %arg5[%c2_57, %c0_58] : memref<3x3xf32, #tpu.memory_space<smem>>
    %133 = vector.broadcast %132 : f32 to vector<3x512xf32>
    %134 = arith.select %131, %133, %129 : vector<3x512xi1>, vector<3x512xf32>
    %c254_i32 = arith.constant 254 : i32
    %135 = vector.broadcast %c254_i32 : i32 to vector<3x512xi32>
    %136 = arith.cmpi sge, %35, %135 : vector<3x512xi32>
    %c254_i32_59 = arith.constant 254 : i32
    %137 = tpu.dynamic_rotate %57 by %c254_i32_59 dim 1 : vector<3x512xf32>, i32 -> vector<3x512xf32>
    %c510_i32 = arith.constant 510 : i32
    %138 = tpu.dynamic_rotate %9 by %c510_i32 dim 1 : vector<3x512xf32>, i32 -> vector<3x512xf32>
    %139 = arith.select %136, %137, %138 : vector<3x512xi1>, vector<3x512xf32>
    %140 = arith.mulf %134, %139 : vector<3x512xf32>
    %141 = arith.addf %128, %140 : vector<3x512xf32>
    %c0_60 = arith.constant 0 : index
    %c0_61 = arith.constant 0 : index
    %142 = vector.load %arg6[%c0_60, %c0_61] : memref<3x3xf32, #tpu.memory_space<vmem>>, vector<3x3xf32>
    %cst_62 = arith.constant dense<0.000000e+00> : vector<3x512xf32>
    %143 = tpu.matmul %142, %141, %cst_62 {dimension_numbers = #tpu.dot_dimension_numbers<[1], [0], [0], [1], [0, 0, 1, 1], [], []>} : vector<3x3xf32>, vector<3x512xf32>, vector<3x512xf32> -> vector<3x512xf32>
    %c0_63 = arith.constant 0 : index
    %c0_64 = arith.constant 0 : index
    %144 = vector.load %arg7[%c0_63, %c0_64] : memref<3x1xf32, #tpu.memory_space<vmem>>, vector<3x1xf32>
    %145 = vector.broadcast %144 : vector<3x1xf32> to vector<3x512xf32>
    %146 = arith.addf %143, %145 : vector<3x512xf32>
    %c0_65 = arith.constant 0 : index
    %c0_66 = arith.constant 0 : index
    %147 = vector.load %arg9[%c0_65, %c0_66] : memref<3x512xf32, #tpu.memory_space<vmem>>, vector<3x512xf32>
    tpu.vector_store %arg9[%c0_65, %c0_66], %146 {strides = array<i32>} : memref<3x512xf32, #tpu.memory_space<vmem>>, vector<3x512xf32>,
    return
  }
  func.func @transform_0(%arg0: i32) -> (i32, i32) {
    %c0_i32 = arith.constant 0 : i32
    %c0_i32_0 = arith.constant 0 : i32
    return %c0_i32, %arg0 : i32, i32
  }
  func.func @transform_1(%arg0: i32) -> (i32, i32) {
    %c0_i32 = arith.constant 0 : i32
    %c0_i32_0 = arith.constant 0 : i32
    %c0_i32_1 = arith.constant 0 : i32
    return %c0_i32, %c0_i32_0 : i32, i32
  }
  func.func @transform_2(%arg0: i32) -> (i32, i32) {
    %c0_i32 = arith.constant 0 : i32
    %c0_i32_0 = arith.constant 0 : i32
    %c0_i32_1 = arith.constant 0 : i32
    return %c0_i32, %c0_i32_0 : i32, i32
  }
  func.func @transform_3(%arg0: i32) -> (i32, i32) {
    %c0_i32 = arith.constant 0 : i32
    %c0_i32_0 = arith.constant 0 : i32
    %c0_i32_1 = arith.constant 0 : i32
    return %c0_i32, %c0_i32_0 : i32, i32
  }
  func.func @transform_4(%arg0: i32) -> (i32, i32) {
    %c0_i32 = arith.constant 0 : i32
    %c0_i32_0 = arith.constant 0 : i32
    %c0_i32_1 = arith.constant 0 : i32
    return %c0_i32, %c0_i32_0 : i32, i32
  }
  func.func @transform_5(%arg0: i32) -> (i32, i32) {
    %c0_i32 = arith.constant 0 : i32
    %c0_i32_0 = arith.constant 0 : i32
    %c0_i32_1 = arith.constant 0 : i32
    return %c0_i32, %c0_i32_0 : i32, i32
  }
  func.func @transform_6(%arg0: i32) -> (i32, i32) {
    %c0_i32 = arith.constant 0 : i32
    %c0_i32_0 = arith.constant 0 : i32
    %c0_i32_1 = arith.constant 0 : i32
    return %c0_i32, %c0_i32_0 : i32, i32
  }
  func.func @transform_7(%arg0: i32) -> (i32, i32, i32) {
    %c0_i32 = arith.constant 0 : i32
    %c0_i32_0 = arith.constant 0 : i32
    %c0_i32_1 = arith.constant 0 : i32
    return %arg0, %c0_i32, %c0_i32_0 : i32, i32, i32
  }
  func.func @transform_8(%arg0: i32) -> (i32, i32) {
    %c0_i32 = arith.constant 0 : i32
    %c0_i32_0 = arith.constant 0 : i32
    return %c0_i32, %arg0 : i32, i32
  }
}

</mosaic_0001>

<llo_original>
// kernel: inverse_imaging_forward.1
$region0: #{inverse_imaging_forward.1}
  #allocation0 [shape = 'u32[]', space=smem, size = 0x4, offset = 0x4, fixed_abs, tag = 'smem constant byte address 0x4 - core index']
  #allocation1 [shape = 'u32[144,128]{1,0:T(1,128)}', space=vmem, size = 0x12000, scoped, tag = 'internal scratch']
  %s0 = inlined_call_operand.vmem [shape: f32[4,512], index: 0, kind: input, shape index: {}]
  %s1 = inlined_call_operand.vmem [shape: f32[64,4], index: 1, kind: input, shape index: {}]
  %s2 = inlined_call_operand.vmem [shape: f32[3,64], index: 2, kind: input, shape index: {}]
  %s3 = inlined_call_operand.vmem [shape: f32[3,1], index: 3, kind: input, shape index: {}]
  %s4 = inlined_call_operand.vmem [shape: f32[3,3], index: 4, kind: input, shape index: {}]
  %s5 = inlined_call_operand.vmem [shape: f32[3,3], index: 5, kind: input, shape index: {}]
  %s6 = inlined_call_operand.vmem [shape: f32[3,1], index: 6, kind: input, shape index: {}]
  %s7 = inlined_call_operand.vmem [shape: f32[2,3,256], index: 7, kind: output, shape index: {0}]
  %s8 = inlined_call_operand.vmem [shape: f32[3,512], index: 8, kind: output, shape index: {1}]
  %9 = xla_tuple %s7, %s8
  %s10 = sld [smem:[#allocation0]]
  $region50: #{inverse_imaging_forward.1} parent=0
    _
  %s12 = ssub.s32 1, %s10
  %s13 = scalar_select 0, %s12, %s10
  $region1: #{inverse_imaging_forward.1} parent=0
    #allocation2 [shape = 'u8[2048]{0}', space=smem, size = 0x800, scoped, tag = 'input window, operand 4, single buffered']
    #allocation3 [shape = 's32[1]{0}', space=sflag, size = 0x4, scoped, tag = 'scoped memory for inverse_imaging_forward.1']
    %14 = vsyncpa [#allocation3], 0
    // Predicated region
    $region2: #{inverse_imaging_forward.1} parent=1 // pred_check
      _
    $region3: #{inverse_imaging_forward.1} parent=1 // pred_check_branch
      %16 = sbr.rel (0) target = $region5
    $region4: #{inverse_imaging_forward.1} parent=1 // pred_region
      _
    $region5: #{inverse_imaging_forward.1} parent=1 // pred_fallthru
      _
    // Predicated region
    $region6: #{inverse_imaging_forward.1} parent=1 // pred_check
      _
    $region7: #{inverse_imaging_forward.1} parent=1 // pred_check_branch
      %18 = sbr.rel (0) target = $region9
    $region8: #{inverse_imaging_forward.1} parent=1 // pred_region
      _
    $region9: #{inverse_imaging_forward.1} parent=1 // pred_fallthru
      _
    // Predicated region
    $region10: #{inverse_imaging_forward.1} parent=1 // pred_check
      _
    $region11: #{inverse_imaging_forward.1} parent=1 // pred_check_branch
      %20 = sbr.rel (0) target = $region13
    $region12: #{inverse_imaging_forward.1} parent=1 // pred_region
      _
    $region13: #{inverse_imaging_forward.1} parent=1 // pred_fallthru
      _
    // Predicated region
    $region14: #{inverse_imaging_forward.1} parent=1 // pred_check
      _
    $region15: #{inverse_imaging_forward.1} parent=1 // pred_check_branch
      %22 = sbr.rel (0) target = $region17
    $region16: #{inverse_imaging_forward.1} parent=1 // pred_region
      _
    $region17: #{inverse_imaging_forward.1} parent=1 // pred_fallthru
      _
    // Predicated region
    $region18: #{inverse_imaging_forward.1} parent=1 // pred_check
      _
    $region19: #{inverse_imaging_forward.1} parent=1 // pred_check_branch
      %24 = sbr.rel (0) target = $region21
    $region20: #{inverse_imaging_forward.1} parent=1 // pred_region
      %s26 = ssub.s32 64, 64
      %27 = vsyncadd [#allocation3], %s26
      %s29 = sshll.u32 %s4, 4
      %s30 = int_to_ptr.vmem [resolvable:$true] %s29
      %32 = dma.vmem_to_smem %s30, 64, [#allocation2], [#allocation3]
    $region21: #{inverse_imaging_forward.1} parent=1 // pred_fallthru
      _
    // Predicated region
    $region22: #{inverse_imaging_forward.1} parent=1 // pred_check
      _
    $region23: #{inverse_imaging_forward.1} parent=1 // pred_check_branch
      %34 = sbr.rel (0) target = $region25
    $region24: #{inverse_imaging_forward.1} parent=1 // pred_region
      _
    $region25: #{inverse_imaging_forward.1} parent=1 // pred_fallthru
      _
    // Predicated region
    $region26: #{inverse_imaging_forward.1} parent=1 // pred_check
      _
    $region27: #{inverse_imaging_forward.1} parent=1 // pred_check_branch
      %36 = sbr.rel (0) target = $region29
    $region28: #{inverse_imaging_forward.1} parent=1 // pred_region
      _
    $region29: #{inverse_imaging_forward.1} parent=1 // pred_fallthru
      _
    // Predicated region
    $region30: #{inverse_imaging_forward.1} parent=1 // pred_check
      _
    $region31: #{inverse_imaging_forward.1} parent=1 // pred_check_branch
      %38 = sbr.rel (0) target = $region33
    $region32: #{inverse_imaging_forward.1} parent=1 // pred_region
      %39 = dma.done [#allocation3], 64
    $region33: #{inverse_imaging_forward.1} parent=1 // pred_fallthru
      _
    %40 = sfence
    %v41 = vld [vmem:[%s1] sm:$0xff]
    %v42 = vld [vmem:[%s1 + $0x8] sm:$0xff]
    %v43 = vld [vmem:[%s1 + $0x10] sm:$0xff]
    %v44 = vld [vmem:[%s1 + $0x18] sm:$0xff]
    %v45 = vld [vmem:[%s1 + $0x20] sm:$0xff]
    %v46 = vld [vmem:[%s1 + $0x28] sm:$0xff]
    %v47 = vld [vmem:[%s1 + $0x30] sm:$0xff]
    %v48 = vld [vmem:[%s1 + $0x38] sm:$0xff]
    %v49 = vld [vmem:[%s0] sm:$0xff]
    %v50 = vld [vmem:[%s0 + $0x8] sm:$0xff]
    %v53 = vcombine.high %v49, %v49
    %v54 = vcombine.high %v50, %v50
    %vm55 = vcmask 31744
    %v57 = vsel %vm55, %v41, 0
    %v60 = vsel %vm55, %v42, 0
    %v63 = vsel %vm55, %v43, 0
    %v66 = vsel %vm55, %v44, 0
    %v69 = vsel %vm55, %v45, 0
    %v72 = vsel %vm55, %v46, 0
    %v75 = vsel %vm55, %v47, 0
    %v78 = vsel %vm55, %v48, 0
    %vm80 = vcmask 1043456
    %v81 = vsel %vm80, %v49, 0
    %v83 = vsel %vm80, %v53, 0
    %v85 = vsel %vm80, %v50, 0
    %v87 = vsel %vm80, %v54, 0
    %89 = vmatprep.subr.mxu0 %v83
    %90 = vmatpush1.msra.mxu0 %v81
    %91 = vmatprep.subr.mxu0 0.0
    %92 = vmatpush1.msra.mxu0 0.0
    %93 = vmatprep.subr.mxu0 0.0
    %94 = vmatpush1.msra.mxu0 0.0
    %95 = vmatprep.subr.mxu0 0.0
    %96 = vmatpush1.msra.mxu0 0.0
    %97 = vmatprep.subr.mxu0 0.0
    %98 = vmatpush1.msra.mxu0 0.0
    %99 = vmatprep.subr.mxu0 0.0
    %100 = vmatpush1.msra.mxu0 0.0
    %101 = vmatprep.subr.mxu0 0.0
    %102 = vmatpush1.msra.mxu0 0.0
    %103 = vmatprep.subr.mxu0 0.0
    %104 = vmatpush1.msra.mxu0 0.0
    %105 = vmatprep.subr.mxu0 0.0
    %106 = vmatpush1.msra.mxu0 0.0
    %107 = vmatprep.subr.mxu0 0.0
    %108 = vmatpush1.msra.mxu0 0.0
    %109 = vmatprep.subr.mxu0 0.0
    %110 = vmatpush1.msra.mxu0 0.0
    %111 = vmatprep.subr.mxu0 0.0
    %112 = vmatpush1.msra.mxu0 0.0
    %113 = vmatprep.subr.mxu0 0.0
    %114 = vmatpush1.msra.mxu0 0.0
    %115 = vmatprep.subr.mxu0 0.0
    %116 = vmatpush1.msra.mxu0 0.0
    %117 = vmatprep.subr.mxu0 0.0
    %118 = vmatpush1.msra.mxu0 0.0
    %119 = vmatprep.subr.mxu0 0.0
    %120 = vmatpush1.msra.mxu0 0.0
    %121 = vmatprep.subr.mxu0 0.0
    %122 = vmatpush1.msra.mxu0 0.0
    %123 = vmatprep.subr.mxu0 0.0
    %124 = vmatpush1.msra.mxu0 0.0
    %125 = vmatprep.subr.mxu0 0.0
    %126 = vmatpush1.msra.mxu0 0.0
    %127 = vmatprep.subr.mxu0 0.0
    %128 = vmatpush1.msra.mxu0 0.0
    %129 = vmatprep.subr.mxu0 0.0
    %130 = vmatpush1.msra.mxu0 0.0
    %131 = vmatprep.subr.mxu0 0.0
    %132 = vmatpush1.msra.mxu0 0.0
    %133 = vmatprep.subr.mxu0 0.0
    %134 = vmatpush1.msra.mxu0 0.0
    %135 = vmatprep.subr.mxu0 0.0
    %136 = vmatpush1.msra.mxu0 0.0
    %137 = vmatprep.subr.mxu0 0.0
    %138 = vmatpush1.msra.mxu0 0.0
    %139 = vmatprep.subr.mxu0 0.0
    %140 = vmatpush1.msra.mxu0 0.0
    %141 = vmatprep.subr.mxu0 0.0
    %142 = vmatpush1.msra.mxu0 0.0
    %143 = vmatprep.subr.mxu0 0.0
    %144 = vmatpush1.msra.mxu0 0.0
    %145 = vmatprep.subr.mxu0 0.0
    %146 = vmatpush1.msra.mxu0 0.0
    %147 = vmatprep.subr.mxu0 0.0
    %148 = vmatpush1.msra.mxu0 0.0
    %149 = vmatprep.subr.mxu0 0.0
    %150 = vmatpush1.msra.mxu0 0.0
    %151 = vmatprep.subr.mxu0 0.0
    %152 = vmatpush1.msra.mxu0 0.0
    %153 = vmatprep.mubr.f32.mxu0 0.0
    %154 = vmatmul.mubr.f32.gmra.mrb[0].mxu0 %v57
    %v155 = vpop.f32.mrb[0].mxu0
    %v156 = vadd.f32 0.0, %v155
    %v157 = vpop.f32.mrb[0].mxu0
    %v158 = vadd.f32 0.0, %v157
    %159 = vmatprep.mubr.f32.mxu0 0.0
    %160 = vmatmul.mubr.f32.gmra.mrb[0].mxu0 %v60
    %v161 = vpop.f32.mrb[0].mxu0
    %v162 = vadd.f32 0.0, %v161
    %v163 = vpop.f32.mrb[0].mxu0
    %v164 = vadd.f32 0.0, %v163
    %165 = vmatprep.mubr.f32.mxu0 0.0
    %166 = vmatmul.mubr.f32.gmra.mrb[0].mxu0 %v63
    %v167 = vpop.f32.mrb[0].mxu0
    %v168 = vadd.f32 0.0, %v167
    %v169 = vpop.f32.mrb[0].mxu0
    %v170 = vadd.f32 0.0, %v169
    %171 = vmatprep.mubr.f32.mxu0 0.0
    %172 = vmatmul.mubr.f32.gmra.mrb[0].mxu0 %v66
    %v173 = vpop.f32.mrb[0].mxu0
    %v174 = vadd.f32 0.0, %v173
    %v175 = vpop.f32.mrb[0].mxu0
    %v176 = vadd.f32 0.0, %v175
    %177 = vmatprep.mubr.f32.mxu0 0.0
    %178 = vmatmul.mubr.f32.gmra.mrb[0].mxu0 %v69
    %v179 = vpop.f32.mrb[0].mxu0
    %v180 = vadd.f32 0.0, %v179
    %v181 = vpop.f32.mrb[0].mxu0
    %v182 = vadd.f32 0.0, %v181
    %183 = vmatprep.mubr.f32.mxu0 0.0
    %184 = vmatmul.mubr.f32.gmra.mrb[0].mxu0 %v72
    %v185 = vpop.f32.mrb[0].mxu0
    %v186 = vadd.f32 0.0, %v185
    %v187 = vpop.f32.mrb[0].mxu0
    %v188 = vadd.f32 0.0, %v187
    %189 = vmatprep.mubr.f32.mxu0 0.0
    %190 = vmatmul.mubr.f32.gmra.mrb[0].mxu0 %v75
    %v191 = vpop.f32.mrb[0].mxu0
    %v192 = vadd.f32 0.0, %v191
    %v193 = vpop.f32.mrb[0].mxu0
    %v194 = vadd.f32 0.0, %v193
    %195 = vmatprep.mubr.f32.mxu0 0.0
    %196 = vmatmul.mubr.f32.gmra.mrb[0].mxu0 %v78
    %v197 = vpop.f32.mrb[0].mxu0
    %v198 = vadd.f32 0.0, %v197
    %v199 = vpop.f32.mrb[0].mxu0
    %v200 = vadd.f32 0.0, %v199
    %201 = vdwg.mxu0
    %202 = vmatprep.subr.mxu0 %v87
    %203 = vmatpush1.msra.mxu0 %v85
    %204 = vmatprep.subr.mxu0 0.0
    %205 = vmatpush1.msra.mxu0 0.0
    %206 = vmatprep.subr.mxu0 0.0
    %207 = vmatpush1.msra.mxu0 0.0
    %208 = vmatprep.subr.mxu0 0.0
    %209 = vmatpush1.msra.mxu0 0.0
    %210 = vmatprep.subr.mxu0 0.0
    %211 = vmatpush1.msra.mxu0 0.0
    %212 = vmatprep.subr.mxu0 0.0
    %213 = vmatpush1.msra.mxu0 0.0
    %214 = vmatprep.subr.mxu0 0.0
    %215 = vmatpush1.msra.mxu0 0.0
    %216 = vmatprep.subr.mxu0 0.0
    %217 = vmatpush1.msra.mxu0 0.0
    %218 = vmatprep.subr.mxu0 0.0
    %219 = vmatpush1.msra.mxu0 0.0
    %220 = vmatprep.subr.mxu0 0.0
    %221 = vmatpush1.msra.mxu0 0.0
    %222 = vmatprep.subr.mxu0 0.0
    %223 = vmatpush1.msra.mxu0 0.0
    %224 = vmatprep.subr.mxu0 0.0
    %225 = vmatpush1.msra.mxu0 0.0
    %226 = vmatprep.subr.mxu0 0.0
    %227 = vmatpush1.msra.mxu0 0.0
    %228 = vmatprep.subr.mxu0 0.0
    %229 = vmatpush1.msra.mxu0 0.0
    %230 = vmatprep.subr.mxu0 0.0
    %231 = vmatpush1.msra.mxu0 0.0
    %232 = vmatprep.subr.mxu0 0.0
    %233 = vmatpush1.msra.mxu0 0.0
    %234 = vmatprep.subr.mxu0 0.0
    %235 = vmatpush1.msra.mxu0 0.0
    %236 = vmatprep.subr.mxu0 0.0
    %237 = vmatpush1.msra.mxu0 0.0
    %238 = vmatprep.subr.mxu0 0.0
    %239 = vmatpush1.msra.mxu0 0.0
    %240 = vmatprep.subr.mxu0 0.0
    %241 = vmatpush1.msra.mxu0 0.0
    %242 = vmatprep.subr.mxu0 0.0
    %243 = vmatpush1.msra.mxu0 0.0
    %244 = vmatprep.subr.mxu0 0.0
    %245 = vmatpush1.msra.mxu0 0.0
    %246 = vmatprep.subr.mxu0 0.0
    %247 = vmatpush1.msra.mxu0 0.0
    %248 = vmatprep.subr.mxu0 0.0
    %249 = vmatpush1.msra.mxu0 0.0
    %250 = vmatprep.subr.mxu0 0.0
    %251 = vmatpush1.msra.mxu0 0.0
    %252 = vmatprep.subr.mxu0 0.0
    %253 = vmatpush1.msra.mxu0 0.0
    %254 = vmatprep.subr.mxu0 0.0
    %255 = vmatpush1.msra.mxu0 0.0
    %256 = vmatprep.subr.mxu0 0.0
    %257 = vmatpush1.msra.mxu0 0.0
    %258 = vmatprep.subr.mxu0 0.0
    %259 = vmatpush1.msra.mxu0 0.0
    %260 = vmatprep.subr.mxu0 0.0
    %261 = vmatpush1.msra.mxu0 0.0
    %262 = vmatprep.subr.mxu0 0.0
    %263 = vmatpush1.msra.mxu0 0.0
    %264 = vmatprep.subr.mxu0 0.0
    %265 = vmatpush1.msra.mxu0 0.0
    %266 = vmatprep.mubr.f32.mxu0 0.0
    %267 = vmatmul.mubr.f32.gmra.mrb[0].mxu0 %v57
    %v268 = vpop.f32.mrb[0].mxu0
    %v269 = vadd.f32 0.0, %v268
    %v270 = vpop.f32.mrb[0].mxu0
    %v271 = vadd.f32 0.0, %v270
    %272 = vmatprep.mubr.f32.mxu0 0.0
    %273 = vmatmul.mubr.f32.gmra.mrb[0].mxu0 %v60
    %v274 = vpop.f32.mrb[0].mxu0
    %v275 = vadd.f32 0.0, %v274
    %v276 = vpop.f32.mrb[0].mxu0
    %v277 = vadd.f32 0.0, %v276
    %278 = vmatprep.mubr.f32.mxu0 0.0
    %279 = vmatmul.mubr.f32.gmra.mrb[0].mxu0 %v63
    %v280 = vpop.f32.mrb[0].mxu0
    %v281 = vadd.f32 0.0, %v280
    %v282 = vpop.f32.mrb[0].mxu0
    %v283 = vadd.f32 0.0, %v282
    %284 = vmatprep.mubr.f32.mxu0 0.0
    %285 = vmatmul.mubr.f32.gmra.mrb[0].mxu0 %v66
    %v286 = vpop.f32.mrb[0].mxu0
    %v287 = vadd.f32 0.0, %v286
    %v288 = vpop.f32.mrb[0].mxu0
    %v289 = vadd.f32 0.0, %v288
    %290 = vmatprep.mubr.f32.mxu0 0.0
    %291 = vmatmul.mubr.f32.gmra.mrb[0].mxu0 %v69
    %v292 = vpop.f32.mrb[0].mxu0
    %v293 = vadd.f32 0.0, %v292
    %v294 = vpop.f32.mrb[0].mxu0
    %v295 = vadd.f32 0.0, %v294
    %296 = vmatprep.mubr.f32.mxu0 0.0
    %297 = vmatmul.mubr.f32.gmra.mrb[0].mxu0 %v72
    %v298 = vpop.f32.mrb[0].mxu0
    %v299 = vadd.f32 0.0, %v298
    %v300 = vpop.f32.mrb[0].mxu0
    %v301 = vadd.f32 0.0, %v300
    %302 = vmatprep.mubr.f32.mxu0 0.0
    %303 = vmatmul.mubr.f32.gmra.mrb[0].mxu0 %v75
    %v304 = vpop.f32.mrb[0].mxu0
    %v305 = vadd.f32 0.0, %v304
    %v306 = vpop.f32.mrb[0].mxu0
    %v307 = vadd.f32 0.0, %v306
    %308 = vmatprep.mubr.f32.mxu0 0.0
    %309 = vmatmul.mubr.f32.gmra.mrb[0].mxu0 %v78
    %v310 = vpop.f32.mrb[0].mxu0
    %v311 = vadd.f32 0.0, %v310
    %v312 = vpop.f32.mrb[0].mxu0
    %v313 = vadd.f32 0.0, %v312
    %314 = vdwg.mxu0
    %v315 = vmax.f32 %v156, 0.0
    %v316 = vmax.f32 %v158, 0.0
    %v317 = vmax.f32 %v269, 0.0
    %v318 = vmax.f32 %v271, 0.0
    %v319 = vmax.f32 %v162, 0.0
    %v320 = vmax.f32 %v164, 0.0
    %v321 = vmax.f32 %v275, 0.0
    %v322 = vmax.f32 %v277, 0.0
    %v323 = vmax.f32 %v168, 0.0
    %v324 = vmax.f32 %v170, 0.0
    %v325 = vmax.f32 %v281, 0.0
    %v326 = vmax.f32 %v283, 0.0
    %v327 = vmax.f32 %v174, 0.0
    %v328 = vmax.f32 %v176, 0.0
    %v329 = vmax.f32 %v287, 0.0
    %v330 = vmax.f32 %v289, 0.0
    %v331 = vmax.f32 %v180, 0.0
    %v332 = vmax.f32 %v182, 0.0
    %v333 = vmax.f32 %v293, 0.0
    %v334 = vmax.f32 %v295, 0.0
    %v335 = vmax.f32 %v186, 0.0
    %v336 = vmax.f32 %v188, 0.0
    %v337 = vmax.f32 %v299, 0.0
    %v338 = vmax.f32 %v301, 0.0
    %v339 = vmax.f32 %v192, 0.0
    %v340 = vmax.f32 %v194, 0.0
    %v341 = vmax.f32 %v305, 0.0
    %v342 = vmax.f32 %v307, 0.0
    %v343 = vmax.f32 %v198, 0.0
    %v344 = vmax.f32 %v200, 0.0
    %v345 = vmax.f32 %v311, 0.0
    %v346 = vmax.f32 %v313, 0.0
    %v347 = vld [vmem:[%s2] sm:$0x7]
    %v348 = vld [vmem:[%s3] sm:$0x7]
    %350 = vset.pattern.permute.xlu0 0
    %351 = vperm.xlu0 %350, %v348
    %v352 = vpop.permute.xlu0 %351
    %vm354 = vcmask 523264
    %v356 = vsel %vm354, %v347, 0
    %358 = vmatprep.subr.mxu0 %v316
    %359 = vmatpush1.msra.mxu0 %v315
    %360 = vmatprep.subr.mxu0 %v320
    %361 = vmatpush1.msra.mxu0 %v319
    %362 = vmatprep.subr.mxu0 %v324
    %363 = vmatpush1.msra.mxu0 %v323
    %364 = vmatprep.subr.mxu0 %v328
    %365 = vmatpush1.msra.mxu0 %v327
    %366 = vmatprep.subr.mxu0 %v332
    %367 = vmatpush1.msra.mxu0 %v331
    %368 = vmatprep.subr.mxu0 %v336
    %369 = vmatpush1.msra.mxu0 %v335
    %370 = vmatprep.subr.mxu0 %v340
    %371 = vmatpush1.msra.mxu0 %v339
    %372 = vmatprep.subr.mxu0 %v344
    %373 = vmatpush1.msra.mxu0 %v343
    %374 = vmatprep.subr.mxu0 0.0
    %375 = vmatpush1.msra.mxu0 0.0
    %376 = vmatprep.subr.mxu0 0.0
    %377 = vmatpush1.msra.mxu0 0.0
    %378 = vmatprep.subr.mxu0 0.0
    %379 = vmatpush1.msra.mxu0 0.0
    %380 = vmatprep.subr.mxu0 0.0
    %381 = vmatpush1.msra.mxu0 0.0
    %382 = vmatprep.subr.mxu0 0.0
    %383 = vmatpush1.msra.mxu0 0.0
    %384 = vmatprep.subr.mxu0 0.0
    %385 = vmatpush1.msra.mxu0 0.0
    %386 = vmatprep.subr.mxu0 0.0
    %387 = vmatpush1.msra.mxu0 0.0
    %388 = vmatprep.subr.mxu0 0.0
    %389 = vmatpush1.msra.mxu0 0.0
    %390 = vmatprep.subr.mxu0 0.0
    %391 = vmatpush1.msra.mxu0 0.0
    %392 = vmatprep.subr.mxu0 0.0
    %393 = vmatpush1.msra.mxu0 0.0
    %394 = vmatprep.subr.mxu0 0.0
    %395 = vmatpush1.msra.mxu0 0.0
    %396 = vmatprep.subr.mxu0 0.0
    %397 = vmatpush1.msra.mxu0 0.0
    %398 = vmatprep.subr.mxu0 0.0
    %399 = vmatpush1.msra.mxu0 0.0
    %400 = vmatprep.subr.mxu0 0.0
    %401 = vmatpush1.msra.mxu0 0.0
    %402 = vmatprep.subr.mxu0 0.0
    %403 = vmatpush1.msra.mxu0 0.0
    %404 = vmatprep.subr.mxu0 0.0
    %405 = vmatpush1.msra.mxu0 0.0
    %406 = vmatprep.subr.mxu0 0.0
    %407 = vmatpush1.msra.mxu0 0.0
    %408 = vmatprep.subr.mxu0 0.0
    %409 = vmatpush1.msra.mxu0 0.0
    %410 = vmatprep.subr.mxu0 0.0
    %411 = vmatpush1.msra.mxu0 0.0
    %412 = vmatprep.subr.mxu0 0.0
    %413 = vmatpush1.msra.mxu0 0.0
    %414 = vmatprep.subr.mxu0 0.0
    %415 = vmatpush1.msra.mxu0 0.0
    %416 = vmatprep.subr.mxu0 0.0
    %417 = vmatpush1.msra.mxu0 0.0
    %418 = vmatprep.subr.mxu0 0.0
    %419 = vmatpush1.msra.mxu0 0.0
    %420 = vmatprep.subr.mxu0 0.0
    %421 = vmatpush1.msra.mxu0 0.0
    %422 = vmatprep.mubr.f32.mxu0 0.0
    %423 = vmatmul.mubr.f32.gmra.mrb[0].mxu0 %v356
    %v424 = vpop.f32.mrb[0].mxu0
    %v425 = vadd.f32 %v352, %v424
    %v426 = vpop.f32.mrb[0].mxu0
    %v427 = vadd.f32 %v352, %v426
    %428 = vdwg.mxu0
    %429 = vmatprep.subr.mxu0 %v318
    %430 = vmatpush1.msra.mxu0 %v317
    %431 = vmatprep.subr.mxu0 %v322
    %432 = vmatpush1.msra.mxu0 %v321
    %433 = vmatprep.subr.mxu0 %v326
    %434 = vmatpush1.msra.mxu0 %v325
    %435 = vmatprep.subr.mxu0 %v330
    %436 = vmatpush1.msra.mxu0 %v329
    %437 = vmatprep.subr.mxu0 %v334
    %438 = vmatpush1.msra.mxu0 %v333
    %439 = vmatprep.subr.mxu0 %v338
    %440 = vmatpush1.msra.mxu0 %v337
    %441 = vmatprep.subr.mxu0 %v342
    %442 = vmatpush1.msra.mxu0 %v341
    %443 = vmatprep.subr.mxu0 %v346
    %444 = vmatpush1.msra.mxu0 %v345
    %445 = vmatprep.subr.mxu0 0.0
    %446 = vmatpush1.msra.mxu0 0.0
    %447 = vmatprep.subr.mxu0 0.0
    %448 = vmatpush1.msra.mxu0 0.0
    %449 = vmatprep.subr.mxu0 0.0
    %450 = vmatpush1.msra.mxu0 0.0
    %451 = vmatprep.subr.mxu0 0.0
    %452 = vmatpush1.msra.mxu0 0.0
    %453 = vmatprep.subr.mxu0 0.0
    %454 = vmatpush1.msra.mxu0 0.0
    %455 = vmatprep.subr.mxu0 0.0
    %456 = vmatpush1.msra.mxu0 0.0
    %457 = vmatprep.subr.mxu0 0.0
    %458 = vmatpush1.msra.mxu0 0.0
    %459 = vmatprep.subr.mxu0 0.0
    %460 = vmatpush1.msra.mxu0 0.0
    %461 = vmatprep.subr.mxu0 0.0
    %462 = vmatpush1.msra.mxu0 0.0
    %463 = vmatprep.subr.mxu0 0.0
    %464 = vmatpush1.msra.mxu0 0.0
    %465 = vmatprep.subr.mxu0 0.0
    %466 = vmatpush1.msra.mxu0 0.0
    %467 = vmatprep.subr.mxu0 0.0
    %468 = vmatpush1.msra.mxu0 0.0
    %469 = vmatprep.subr.mxu0 0.0
    %470 = vmatpush1.msra.mxu0 0.0
    %471 = vmatprep.subr.mxu0 0.0
    %472 = vmatpush1.msra.mxu0 0.0
    %473 = vmatprep.subr.mxu0 0.0
    %474 = vmatpush1.msra.mxu0 0.0
    %475 = vmatprep.subr.mxu0 0.0
    %476 = vmatpush1.msra.mxu0 0.0
    %477 = vmatprep.subr.mxu0 0.0
    %478 = vmatpush1.msra.mxu0 0.0
    %479 = vmatprep.subr.mxu0 0.0
    %480 = vmatpush1.msra.mxu0 0.0
    %481 = vmatprep.subr.mxu0 0.0
    %482 = vmatpush1.msra.mxu0 0.0
    %483 = vmatprep.subr.mxu0 0.0
    %484 = vmatpush1.msra.mxu0 0.0
    %485 = vmatprep.subr.mxu0 0.0
    %486 = vmatpush1.msra.mxu0 0.0
    %487 = vmatprep.subr.mxu0 0.0
    %488 = vmatpush1.msra.mxu0 0.0
    %489 = vmatprep.subr.mxu0 0.0
    %490 = vmatpush1.msra.mxu0 0.0
    %491 = vmatprep.subr.mxu0 0.0
    %492 = vmatpush1.msra.mxu0 0.0
    %493 = vmatprep.mubr.f32.mxu0 0.0
    %494 = vmatmul.mubr.f32.gmra.mrb[0].mxu0 %v356
    %v495 = vpop.f32.mrb[0].mxu0
    %v496 = vadd.f32 %v352, %v495
    %v497 = vpop.f32.mrb[0].mxu0
    %v498 = vadd.f32 %v352, %v497
    %499 = vdwg.mxu0
    %v502 = vcombine.low %v425, %v427
    %504 = vst [vmem:[%s7] sm:$0x77] %v502
    %v507 = vcombine.low %v496, %v498
    %s509 = scalar_lea.vmem %s7, 8
    %510 = vst [vmem:[%s509] sm:$0x77] %v507
    %v511 = vlaneseq
    %v512 = vand.u32 %v511, 127
    %v513 = vadd.s32 %v512, 128
    %v514 = vadd.s32 %v512, 256
    %v515 = vadd.s32 %v512, 384
    %v516 = vlaneseq
    %v517 = vshrl.u32 %v516, 7
    %vm518 = vcmp.lt.s32.totalorder %v512, 0
    %v519 = vsub.s32 0, %v512
    %v520 = vsel %vm518, %v519, %v512
    %v521 = vshrl.u32 %v520, 8
    %v522 = vand.u32 %v520, 255
    %v523 = vsub.s32 0, %v522
    %v524 = vsel %vm518, %v523, %v522
    %vm525 = vcmp.lt.s32.totalorder %v513, 0
    %v526 = vsub.s32 0, %v513
    %v527 = vsel %vm525, %v526, %v513
    %v528 = vshrl.u32 %v527, 8
    %v529 = vand.u32 %v527, 255
    %v530 = vsub.s32 0, %v529
    %v531 = vsel %vm525, %v530, %v529
    %vm532 = vcmp.lt.s32.totalorder %v514, 0
    %v533 = vsub.s32 0, %v514
    %v534 = vsel %vm532, %v533, %v514
    %v535 = vshrl.u32 %v534, 8
    %v536 = vand.u32 %v534, 255
    %v537 = vsub.s32 0, %v536
    %v538 = vsel %vm532, %v537, %v536
    %vm539 = vcmp.lt.s32.totalorder %v515, 0
    %v540 = vsub.s32 0, %v515
    %v541 = vsel %vm539, %v540, %v515
    %v542 = vshrl.u32 %v541, 8
    %v543 = vand.u32 %v541, 255
    %v544 = vsub.s32 0, %v543
    %v545 = vsel %vm539, %v544, %v543
    %vm546 = vcmp.ne.s32.totalorder %v524, 0
    %vm547 = vcmp.ne.s32.totalorder %v531, 0
    %vm548 = vcmp.ne.s32.totalorder %v538, 0
    %vm549 = vcmp.ne.s32.totalorder %v545, 0
    %vm550 = vcmp.lt.s32.totalorder %v524, 0
    %vm551 = vcmp.lt.s32.totalorder %v531, 0
    %vm552 = vcmp.lt.s32.totalorder %v538, 0
    %vm553 = vcmp.lt.s32.totalorder %v545, 0
    %vm554 = vmand %vm550, %vm546
    %vm555 = vmand %vm551, %vm547
    %vm556 = vmand %vm552, %vm548
    %vm557 = vmand %vm553, %vm549
    %v558 = vadd.s32 %v524, 256
    %v559 = vadd.s32 %v531, 256
    %v560 = vadd.s32 %v538, 256
    %v561 = vadd.s32 %v545, 256
    %v562 = vsel %vm554, %v558, %v524
    %v563 = vsel %vm555, %v559, %v531
    %v564 = vsel %vm556, %v560, %v538
    %v565 = vsel %vm557, %v561, %v545
    %v566 = vmul.u32 %v517, 256
    %v567 = vadd.s32 %v566, %v562
    %v568 = vadd.s32 %v566, %v563
    %v569 = vadd.s32 %v566, %v564
    %v570 = vadd.s32 %v566, %v565
    %vm571 = vcmp.lt.s32.totalorder %v567, 0
    %v572 = vsub.s32 0, %v567
    %v573 = vsel %vm571, %v572, %v567
    %v574 = vmul.u32.u64.compose %v573, 2863311531
    %v575 = vextract.low.u32 %v574
    %v576 = vextract.high.u32 %v574
    %v577 = vshrl.u32 %v576, 1
    %v578 = vmul.u32 %v577, 3
    %v579 = vsub.s32 %v573, %v578
    %v580 = vsub.s32 0, %v579
    %v581 = vsel %vm571, %v580, %v579
    %vm582 = vcmp.lt.s32.totalorder %v568, 0
    %v583 = vsub.s32 0, %v568
    %v584 = vsel %vm582, %v583, %v568
    %v585 = vmul.u32.u64.compose %v584, 2863311531
    %v586 = vextract.low.u32 %v585
    %v587 = vextract.high.u32 %v585
    %v588 = vshrl.u32 %v587, 1
    %v589 = vmul.u32 %v588, 3
    %v590 = vsub.s32 %v584, %v589
    %v591 = vsub.s32 0, %v590
    %v592 = vsel %vm582, %v591, %v590
    %vm593 = vcmp.lt.s32.totalorder %v569, 0
    %v594 = vsub.s32 0, %v569
    %v595 = vsel %vm593, %v594, %v569
    %v596 = vmul.u32.u64.compose %v595, 2863311531
    %v597 = vextract.low.u32 %v596
    %v598 = vextract.high.u32 %v596
    %v599 = vshrl.u32 %v598, 1
    %v600 = vmul.u32 %v599, 3
    %v601 = vsub.s32 %v595, %v600
    %v602 = vsub.s32 0, %v601
    %v603 = vsel %vm593, %v602, %v601
    %vm604 = vcmp.lt.s32.totalorder %v570, 0
    %v605 = vsub.s32 0, %v570
    %v606 = vsel %vm604, %v605, %v570
    %v607 = vmul.u32.u64.compose %v606, 2863311531
    %v608 = vextract.low.u32 %v607
    %v609 = vextract.high.u32 %v607
    %v610 = vshrl.u32 %v609, 1
    %v611 = vmul.u32 %v610, 3
    %v612 = vsub.s32 %v606, %v611
    %v613 = vsub.s32 0, %v612
    %v614 = vsel %vm604, %v613, %v612
    %vm615 = vcmp.ne.s32.totalorder %v581, 0
    %vm616 = vcmp.ne.s32.totalorder %v592, 0
    %vm617 = vcmp.ne.s32.totalorder %v603, 0
    %vm618 = vcmp.ne.s32.totalorder %v614, 0
    %vm619 = vcmp.lt.s32.totalorder %v581, 0
    %vm620 = vcmp.lt.s32.totalorder %v592, 0
    %vm621 = vcmp.lt.s32.totalorder %v603, 0
    %vm622 = vcmp.lt.s32.totalorder %v614, 0
    %vm623 = vmand %vm619, %vm615
    %vm624 = vmand %vm620, %vm616
    %vm625 = vmand %vm621, %vm617
    %vm626 = vmand %vm622, %vm618
    %v627 = vadd.s32 %v581, 3
    %v628 = vadd.s32 %v592, 3
    %v629 = vadd.s32 %v603, 3
    %v630 = vadd.s32 %v614, 3
    %v631 = vsel %vm623, %v627, %v581
    %v632 = vsel %vm624, %v628, %v592
    %v633 = vsel %vm625, %v629, %v603
    %v634 = vsel %vm626, %v630, %v614
    %v635 = vrot.slane %v425, 1
    %v636 = vrot.slane %v427, 1
    %v637 = vrot.slane %v496, 1
    %v638 = vrot.slane %v498, 1
    %v643 = vrot.slane %v425, 6
    %v644 = vrot.slane %v427, 6
    %v645 = vrot.slane %v496, 6
    %v646 = vrot.slane %v498, 6
    %vm651 = vcmask 1041408
    %v652 = vsel %vm651, %v635, %v643
    %v653 = vsel %vm651, %v636, %v644
    %v654 = vsel %vm651, %v637, %v645
    %v655 = vsel %vm651, %v638, %v646
    %v656 = vrot.slane %v425, 2
    %v657 = vrot.slane %v427, 2
    %v658 = vrot.slane %v496, 2
    %v659 = vrot.slane %v498, 2
    %v664 = vrot.slane %v425, 7
    %v665 = vrot.slane %v427, 7
    %v666 = vrot.slane %v496, 7
    %v667 = vrot.slane %v498, 7
    %vm672 = vcmask 1040384
    %v673 = vsel %vm672, %v656, %v664
    %v674 = vsel %vm672, %v657, %v665
    %v675 = vsel %vm672, %v658, %v666
    %v676 = vsel %vm672, %v659, %v667
    %vm677 = vcmp.eq.s32.totalorder %v631, 2
    %vm678 = vcmp.eq.s32.totalorder %v632, 2
    %vm679 = vcmp.eq.s32.totalorder %v633, 2
    %vm680 = vcmp.eq.s32.totalorder %v634, 2
    %s681 = sld [smem:[#allocation2 + $0x2]]
    %v682 = vstv %s681
    %v683 = vsel %vm677, %v682, 0.0
    %v684 = vsel %vm678, %v682, 0.0
    %v685 = vsel %vm679, %v682, 0.0
    %v686 = vsel %vm680, %v682, 0.0
    %vm687 = vcmp.lt.s32.totalorder %v562, 2
    %vm688 = vcmp.lt.s32.totalorder %v563, 2
    %vm689 = vcmp.lt.s32.totalorder %v564, 2
    %vm690 = vcmp.lt.s32.totalorder %v565, 2
    %691 = vrot.lane.b32.xlu0 %v673, 2
    %v692 = vpop.permute.xlu0 %691
    %693 = vrot.lane.b32.xlu0 %v674, 2
    %v694 = vpop.permute.xlu0 %693
    %695 = vrot.lane.b32.xlu0 %v675, 2
    %v696 = vpop.permute.xlu0 %695
    %697 = vrot.lane.b32.xlu0 %v676, 2
    %v698 = vpop.permute.xlu0 %697
    %vm699 = vcmp.lt.s32.totalorder %v512, 2
    %v700 = vsel %vm699, %v696, %v698
    %v701 = vsel %vm699, %v694, %v696
    %v702 = vsel %vm699, %v692, %v694
    %v703 = vsel %vm699, %v698, %v692
    %704 = vrot.lane.b32.xlu0 %v425, 2
    %v705 = vpop.permute.xlu0 %704
    %706 = vrot.lane.b32.xlu0 %v427, 2
    %v707 = vpop.permute.xlu0 %706
    %708 = vrot.lane.b32.xlu0 %v496, 2
    %v709 = vpop.permute.xlu0 %708
    %710 = vrot.lane.b32.xlu0 %v498, 2
    %v711 = vpop.permute.xlu0 %710
    %v712 = vsel %vm699, %v709, %v711
    %v713 = vsel %vm699, %v707, %v709
    %v714 = vsel %vm699, %v705, %v707
    %v715 = vsel %vm699, %v711, %v705
    %v716 = vsel %vm687, %v701, %v715
    %v717 = vsel %vm688, %v700, %v714
    %v718 = vsel %vm689, %v703, %v713
    %v719 = vsel %vm690, %v702, %v712
    %v720 = vmul.f32 %v683, %v716
    %v721 = vmul.f32 %v684, %v717
    %v722 = vmul.f32 %v685, %v718
    %v723 = vmul.f32 %v686, %v719
    %v724 = vadd.f32 %v720, 0.0
    %v725 = vadd.f32 %v721, 0.0
    %v726 = vadd.f32 %v722, 0.0
    %v727 = vadd.f32 %v723, 0.0
    %vm728 = vcmp.eq.s32.totalorder %v631, 1
    %vm729 = vcmp.eq.s32.totalorder %v632, 1
    %vm730 = vcmp.eq.s32.totalorder %v633, 1
    %vm731 = vcmp.eq.s32.totalorder %v634, 1
    %s732 = sld [smem:[#allocation2 + $0x1]]
    %v733 = vstv %s732
    %v734 = vsel %vm728, %v733, 0.0
    %v735 = vsel %vm729, %v733, 0.0
    %v736 = vsel %vm730, %v733, 0.0
    %v737 = vsel %vm731, %v733, 0.0
    %s738 = sld [smem:[#allocation2 + $0x82]]
    %v739 = vstv %s738
    %v740 = vsel %vm677, %v739, %v734
    %v741 = vsel %vm678, %v739, %v735
    %v742 = vsel %vm679, %v739, %v736
    %v743 = vsel %vm680, %v739, %v737
    %vm744 = vcmp.lt.s32.totalorder %v562, 1
    %vm745 = vcmp.lt.s32.totalorder %v563, 1
    %vm746 = vcmp.lt.s32.totalorder %v564, 1
    %vm747 = vcmp.lt.s32.totalorder %v565, 1
    %748 = vrot.lane.b32.xlu0 %v673, 1
    %v749 = vpop.permute.xlu0 %748
    %750 = vrot.lane.b32.xlu0 %v674, 1
    %v751 = vpop.permute.xlu0 %750
    %752 = vrot.lane.b32.xlu0 %v675, 1
    %v753 = vpop.permute.xlu0 %752
    %754 = vrot.lane.b32.xlu0 %v676, 1
    %v755 = vpop.permute.xlu0 %754
    %vm756 = vcmp.lt.s32.totalorder %v512, 1
    %v757 = vsel %vm756, %v753, %v755
    %v758 = vsel %vm756, %v751, %v753
    %v759 = vsel %vm756, %v749, %v751
    %v760 = vsel %vm756, %v755, %v749
    %761 = vrot.lane.b32.xlu0 %v425, 1
    %v762 = vpop.permute.xlu0 %761
    %763 = vrot.lane.b32.xlu0 %v427, 1
    %v764 = vpop.permute.xlu0 %763
    %765 = vrot.lane.b32.xlu0 %v496, 1
    %v766 = vpop.permute.xlu0 %765
    %767 = vrot.lane.b32.xlu0 %v498, 1
    %v768 = vpop.permute.xlu0 %767
    %v769 = vsel %vm756, %v766, %v768
    %v770 = vsel %vm756, %v764, %v766
    %v771 = vsel %vm756, %v762, %v764
    %v772 = vsel %vm756, %v768, %v762
    %v773 = vsel %vm744, %v758, %v772
    %v774 = vsel %vm745, %v757, %v771
    %v775 = vsel %vm746, %v760, %v770
    %v776 = vsel %vm747, %v759, %v769
    %v777 = vmul.f32 %v740, %v773
    %v778 = vmul.f32 %v741, %v774
    %v779 = vmul.f32 %v742, %v775
    %v780 = vmul.f32 %v743, %v776
    %v781 = vadd.f32 %v724, %v777
    %v782 = vadd.f32 %v725, %v778
    %v783 = vadd.f32 %v726, %v779
    %v784 = vadd.f32 %v727, %v780
    %vm785 = vcmp.eq.s32.totalorder %v631, 0
    %vm786 = vcmp.eq.s32.totalorder %v632, 0
    %vm787 = vcmp.eq.s32.totalorder %v633, 0
    %vm788 = vcmp.eq.s32.totalorder %v634, 0
    %s789 = sld [smem:[#allocation2]]
    %v790 = vstv %s789
    %v791 = vsel %vm785, %v790, 0.0
    %v792 = vsel %vm786, %v790, 0.0
    %v793 = vsel %vm787, %v790, 0.0
    %v794 = vsel %vm788, %v790, 0.0
    %s795 = sld [smem:[#allocation2 + $0x81]]
    %v796 = vstv %s795
    %v797 = vsel %vm728, %v796, %v791
    %v798 = vsel %vm729, %v796, %v792
    %v799 = vsel %vm730, %v796, %v793
    %v800 = vsel %vm731, %v796, %v794
    %s801 = sld [smem:[#allocation2 + $0x102]]
    %v802 = vstv %s801
    %v803 = vsel %vm677, %v802, %v797
    %v804 = vsel %vm678, %v802, %v798
    %v805 = vsel %vm679, %v802, %v799
    %v806 = vsel %vm680, %v802, %v800
    %v807 = vmul.f32 %v803, %v425
    %v808 = vmul.f32 %v804, %v427
    %v809 = vmul.f32 %v805, %v496
    %v810 = vmul.f32 %v806, %v498
    %v811 = vadd.f32 %v781, %v807
    %v812 = vadd.f32 %v782, %v808
    %v813 = vadd.f32 %v783, %v809
    %v814 = vadd.f32 %v784, %v810
    %s815 = sld [smem:[#allocation2 + $0x80]]
    %v816 = vstv %s815
    %v817 = vsel %vm785, %v816, 0.0
    %v818 = vsel %vm786, %v816, 0.0
    %v819 = vsel %vm787, %v816, 0.0
    %v820 = vsel %vm788, %v816, 0.0
    %s821 = sld [smem:[#allocation2 + $0x101]]
    %v822 = vstv %s821
    %v823 = vsel %vm728, %v822, %v817
    %v824 = vsel %vm729, %v822, %v818
    %v825 = vsel %vm730, %v822, %v819
    %v826 = vsel %vm731, %v822, %v820
    %vm827 = vcmp.ge.s32.totalorder %v562, 255
    %vm828 = vcmp.ge.s32.totalorder %v563, 255
    %vm829 = vcmp.ge.s32.totalorder %v564, 255
    %vm830 = vcmp.ge.s32.totalorder %v565, 255
    %831 = vrot.lane.b32.xlu0 %v652, 127
    %v832 = vpop.permute.xlu0 %831
    %833 = vrot.lane.b32.xlu0 %v653, 127
    %v834 = vpop.permute.xlu0 %833
    %835 = vrot.lane.b32.xlu0 %v654, 127
    %v836 = vpop.permute.xlu0 %835
    %837 = vrot.lane.b32.xlu0 %v655, 127
    %v838 = vpop.permute.xlu0 %837
    %vm839 = vcmp.lt.s32.totalorder %v512, 127
    %v840 = vsel %vm839, %v836, %v838
    %v841 = vsel %vm839, %v834, %v836
    %v842 = vsel %vm839, %v832, %v834
    %v843 = vsel %vm839, %v838, %v832
    %844 = vrot.lane.b32.xlu0 %v425, 127
    %v845 = vpop.permute.xlu0 %844
    %846 = vrot.lane.b32.xlu0 %v427, 127
    %v847 = vpop.permute.xlu0 %846
    %848 = vrot.lane.b32.xlu0 %v496, 127
    %v849 = vpop.permute.xlu0 %848
    %850 = vrot.lane.b32.xlu0 %v498, 127
    %v851 = vpop.permute.xlu0 %850
    %v852 = vsel %vm839, %v849, %v851
    %v853 = vsel %vm839, %v847, %v849
    %v854 = vsel %vm839, %v845, %v847
    %v855 = vsel %vm839, %v851, %v845
    %v856 = vsel %vm827, %v840, %v854
    %v857 = vsel %vm828, %v843, %v853
    %v858 = vsel %vm829, %v842, %v852
    %v859 = vsel %vm830, %v841, %v855
    %v860 = vmul.f32 %v823, %v856
    %v861 = vmul.f32 %v824, %v857
    %v862 = vmul.f32 %v825, %v858
    %v863 = vmul.f32 %v826, %v859
    %v864 = vadd.f32 %v811, %v860
    %v865 = vadd.f32 %v812, %v861
    %v866 = vadd.f32 %v813, %v862
    %v867 = vadd.f32 %v814, %v863
    %s868 = sld [smem:[#allocation2 + $0x100]]
    %v869 = vstv %s868
    %v870 = vsel %vm785, %v869, 0.0
    %v871 = vsel %vm786, %v869, 0.0
    %v872 = vsel %vm787, %v869, 0.0
    %v873 = vsel %vm788, %v869, 0.0
    %vm874 = vcmp.ge.s32.totalorder %v562, 254
    %vm875 = vcmp.ge.s32.totalorder %v563, 254
    %vm876 = vcmp.ge.s32.totalorder %v564, 254
    %vm877 = vcmp.ge.s32.totalorder %v565, 254
    %878 = vrot.lane.b32.xlu0 %v652, 126
    %v879 = vpop.permute.xlu0 %878
    %880 = vrot.lane.b32.xlu0 %v653, 126
    %v881 = vpop.permute.xlu0 %880
    %882 = vrot.lane.b32.xlu0 %v654, 126
    %v883 = vpop.permute.xlu0 %882
    %884 = vrot.lane.b32.xlu0 %v655, 126
    %v885 = vpop.permute.xlu0 %884
    %vm886 = vcmp.lt.s32.totalorder %v512, 126
    %v887 = vsel %vm886, %v883, %v885
    %v888 = vsel %vm886, %v881, %v883
    %v889 = vsel %vm886, %v879, %v881
    %v890 = vsel %vm886, %v885, %v879
    %891 = vrot.lane.b32.xlu0 %v425, 126
    %v892 = vpop.permute.xlu0 %891
    %893 = vrot.lane.b32.xlu0 %v427, 126
    %v894 = vpop.permute.xlu0 %893
    %895 = vrot.lane.b32.xlu0 %v496, 126
    %v896 = vpop.permute.xlu0 %895
    %897 = vrot.lane.b32.xlu0 %v498, 126
    %v898 = vpop.permute.xlu0 %897
    %v899 = vsel %vm886, %v896, %v898
    %v900 = vsel %vm886, %v894, %v896
    %v901 = vsel %vm886, %v892, %v894
    %v902 = vsel %vm886, %v898, %v892
    %v903 = vsel %vm874, %v887, %v901
    %v904 = vsel %vm875, %v890, %v900
    %v905 = vsel %vm876, %v889, %v899
    %v906 = vsel %vm877, %v888, %v902
    %v907 = vmul.f32 %v870, %v903
    %v908 = vmul.f32 %v871, %v904
    %v909 = vmul.f32 %v872, %v905
    %v910 = vmul.f32 %v873, %v906
    %v911 = vadd.f32 %v864, %v907
    %v912 = vadd.f32 %v865, %v908
    %v913 = vadd.f32 %v866, %v909
    %v914 = vadd.f32 %v867, %v910
    %v915 = vld [vmem:[%s5] sm:$0x7]
    %v916 = vld [vmem:[%s6] sm:$0x7]
    %918 = vset.pattern.permute.xlu0 0
    %919 = vperm.xlu0 %918, %v916
    %v920 = vpop.permute.xlu0 %919
    %vm922 = vcmask 23552
    %v924 = vsel %vm922, %v915, 0
    %vm926 = vcmask 1042432
    %v928 = vsel %vm926, %v911, 0
    %v931 = vsel %vm926, %v912, 0
    %v934 = vsel %vm926, %v913, 0
    %v937 = vsel %vm926, %v914, 0
    %939 = vmatprep.subr.mxu0 %v931
    %940 = vmatpush1.msra.mxu0 %v928
    %941 = vmatprep.subr.mxu0 0.0
    %942 = vmatpush1.msra.mxu0 0.0
    %943 = vmatprep.subr.mxu0 0.0
    %944 = vmatpush1.msra.mxu0 0.0
    %945 = vmatprep.subr.mxu0 0.0
    %946 = vmatpush1.msra.mxu0 0.0
    %947 = vmatprep.subr.mxu0 0.0
    %948 = vmatpush1.msra.mxu0 0.0
    %949 = vmatprep.subr.mxu0 0.0
    %950 = vmatpush1.msra.mxu0 0.0
    %951 = vmatprep.subr.mxu0 0.0
    %952 = vmatpush1.msra.mxu0 0.0
    %953 = vmatprep.subr.mxu0 0.0
    %954 = vmatpush1.msra.mxu0 0.0
    %955 = vmatprep.subr.mxu0 0.0
    %956 = vmatpush1.msra.mxu0 0.0
    %957 = vmatprep.subr.mxu0 0.0
    %958 = vmatpush1.msra.mxu0 0.0
    %959 = vmatprep.subr.mxu0 0.0
    %960 = vmatpush1.msra.mxu0 0.0
    %961 = vmatprep.subr.mxu0 0.0
    %962 = vmatpush1.msra.mxu0 0.0
    %963 = vmatprep.subr.mxu0 0.0
    %964 = vmatpush1.msra.mxu0 0.0
    %965 = vmatprep.subr.mxu0 0.0
    %966 = vmatpush1.msra.mxu0 0.0
    %967 = vmatprep.subr.mxu0 0.0
    %968 = vmatpush1.msra.mxu0 0.0
    %969 = vmatprep.subr.mxu0 0.0
    %970 = vmatpush1.msra.mxu0 0.0
    %971 = vmatprep.subr.mxu0 0.0
    %972 = vmatpush1.msra.mxu0 0.0
    %973 = vmatprep.subr.mxu0 0.0
    %974 = vmatpush1.msra.mxu0 0.0
    %975 = vmatprep.subr.mxu0 0.0
    %976 = vmatpush1.msra.mxu0 0.0
    %977 = vmatprep.subr.mxu0 0.0
    %978 = vmatpush1.msra.mxu0 0.0
    %979 = vmatprep.subr.mxu0 0.0
    %980 = vmatpush1.msra.mxu0 0.0
    %981 = vmatprep.subr.mxu0 0.0
    %982 = vmatpush1.msra.mxu0 0.0
    %983 = vmatprep.subr.mxu0 0.0
    %984 = vmatpush1.msra.mxu0 0.0
    %985 = vmatprep.subr.mxu0 0.0
    %986 = vmatpush1.msra.mxu0 0.0
    %987 = vmatprep.subr.mxu0 0.0
    %988 = vmatpush1.msra.mxu0 0.0
    %989 = vmatprep.subr.mxu0 0.0
    %990 = vmatpush1.msra.mxu0 0.0
    %991 = vmatprep.subr.mxu0 0.0
    %992 = vmatpush1.msra.mxu0 0.0
    %993 = vmatprep.subr.mxu0 0.0
    %994 = vmatpush1.msra.mxu0 0.0
    %995 = vmatprep.subr.mxu0 0.0
    %996 = vmatpush1.msra.mxu0 0.0
    %997 = vmatprep.subr.mxu0 0.0
    %998 = vmatpush1.msra.mxu0 0.0
    %999 = vmatprep.subr.mxu0 0.0
    %1000 = vmatpush1.msra.mxu0 0.0
    %1001 = vmatprep.subr.mxu0 0.0
    %1002 = vmatpush1.msra.mxu0 0.0
    %1003 = vmatprep.mubr.f32.mxu0 0.0
    %1004 = vmatmul.mubr.f32.gmra.mrb[0].mxu0 %v924
    %v1005 = vpop.f32.mrb[0].mxu0
    %v1006 = vadd.f32 %v920, %v1005
    %v1007 = vpop.f32.mrb[0].mxu0
    %v1008 = vadd.f32 %v920, %v1007
    %1009 = vdwg.mxu0
    %1010 = vmatprep.subr.mxu0 %v937
    %1011 = vmatpush1.msra.mxu0 %v934
    %1012 = vmatprep.subr.mxu0 0.0
    %1013 = vmatpush1.msra.mxu0 0.0
    %1014 = vmatprep.subr.mxu0 0.0
    %1015 = vmatpush1.msra.mxu0 0.0
    %1016 = vmatprep.subr.mxu0 0.0
    %1017 = vmatpush1.msra.mxu0 0.0
    %1018 = vmatprep.subr.mxu0 0.0
    %1019 = vmatpush1.msra.mxu0 0.0
    %1020 = vmatprep.subr.mxu0 0.0
    %1021 = vmatpush1.msra.mxu0 0.0
    %1022 = vmatprep.subr.mxu0 0.0
    %1023 = vmatpush1.msra.mxu0 0.0
    %1024 = vmatprep.subr.mxu0 0.0
    %1025 = vmatpush1.msra.mxu0 0.0
    %1026 = vmatprep.subr.mxu0 0.0
    %1027 = vmatpush1.msra.mxu0 0.0
    %1028 = vmatprep.subr.mxu0 0.0
    %1029 = vmatpush1.msra.mxu0 0.0
    %1030 = vmatprep.subr.mxu0 0.0
    %1031 = vmatpush1.msra.mxu0 0.0
    %1032 = vmatprep.subr.mxu0 0.0
    %1033 = vmatpush1.msra.mxu0 0.0
    %1034 = vmatprep.subr.mxu0 0.0
    %1035 = vmatpush1.msra.mxu0 0.0
    %1036 = vmatprep.subr.mxu0 0.0
    %1037 = vmatpush1.msra.mxu0 0.0
    %1038 = vmatprep.subr.mxu0 0.0
    %1039 = vmatpush1.msra.mxu0 0.0
    %1040 = vmatprep.subr.mxu0 0.0
    %1041 = vmatpush1.msra.mxu0 0.0
    %1042 = vmatprep.subr.mxu0 0.0
    %1043 = vmatpush1.msra.mxu0 0.0
    %1044 = vmatprep.subr.mxu0 0.0
    %1045 = vmatpush1.msra.mxu0 0.0
    %1046 = vmatprep.subr.mxu0 0.0
    %1047 = vmatpush1.msra.mxu0 0.0
    %1048 = vmatprep.subr.mxu0 0.0
    %1049 = vmatpush1.msra.mxu0 0.0
    %1050 = vmatprep.subr.mxu0 0.0
    %1051 = vmatpush1.msra.mxu0 0.0
    %1052 = vmatprep.subr.mxu0 0.0
    %1053 = vmatpush1.msra.mxu0 0.0
    %1054 = vmatprep.subr.mxu0 0.0
    %1055 = vmatpush1.msra.mxu0 0.0
    %1056 = vmatprep.subr.mxu0 0.0
    %1057 = vmatpush1.msra.mxu0 0.0
    %1058 = vmatprep.subr.mxu0 0.0
    %1059 = vmatpush1.msra.mxu0 0.0
    %1060 = vmatprep.subr.mxu0 0.0
    %1061 = vmatpush1.msra.mxu0 0.0
    %1062 = vmatprep.subr.mxu0 0.0
    %1063 = vmatpush1.msra.mxu0 0.0
    %1064 = vmatprep.subr.mxu0 0.0
    %1065 = vmatpush1.msra.mxu0 0.0
    %1066 = vmatprep.subr.mxu0 0.0
    %1067 = vmatpush1.msra.mxu0 0.0
    %1068 = vmatprep.subr.mxu0 0.0
    %1069 = vmatpush1.msra.mxu0 0.0
    %1070 = vmatprep.subr.mxu0 0.0
    %1071 = vmatpush1.msra.mxu0 0.0
    %1072 = vmatprep.subr.mxu0 0.0
    %1073 = vmatpush1.msra.mxu0 0.0
    %1074 = vmatprep.mubr.f32.mxu0 0.0
    %1075 = vmatmul.mubr.f32.gmra.mrb[0].mxu0 %v924
    %v1076 = vpop.f32.mrb[0].mxu0
    %v1077 = vadd.f32 %v920, %v1076
    %v1078 = vpop.f32.mrb[0].mxu0
    %v1079 = vadd.f32 %v920, %v1078
    %1080 = vdwg.mxu0
    %v1085 = vcombine.low %v1006, %v1008
    %v1086 = vcombine.low %v1077, %v1079
    %1089 = vst [vmem:[%s8] sm:$0x77] %v1085
    %1090 = vst [vmem:[%s8 + $0x8] sm:$0x77] %v1086
    // Predicated region
    $region34: #{inverse_imaging_forward.1} parent=1 // pred_check
      _
    $region35: #{inverse_imaging_forward.1} parent=1 // pred_check_branch
      %1092 = sbr.rel (0) target = $region37
    $region36: #{inverse_imaging_forward.1} parent=1 // pred_region
      _
    $region37: #{inverse_imaging_forward.1} parent=1 // pred_fallthru
      _
    // Predicated region
    $region38: #{inverse_imaging_forward.1} parent=1 // pred_check
      _
    $region39: #{inverse_imaging_forward.1} parent=1 // pred_check_branch
      %1094 = sbr.rel (0) target = $region41
    $region40: #{inverse_imaging_forward.1} parent=1 // pred_region
      _
    $region41: #{inverse_imaging_forward.1} parent=1 // pred_fallthru
      _
    // Predicated region
    $region42: #{inverse_imaging_forward.1} parent=1 // pred_check
      _
    $region43: #{inverse_imaging_forward.1} parent=1 // pred_check_branch
      %1096 = sbr.rel (0) target = $region45
    $region44: #{inverse_imaging_forward.1} parent=1 // pred_region
      _
    $region45: #{inverse_imaging_forward.1} parent=1 // pred_fallthru
      _
    // Predicated region
    $region46: #{inverse_imaging_forward.1} parent=1 // pred_check
      _
    $region47: #{inverse_imaging_forward.1} parent=1 // pred_check_branch
      %1098 = sbr.rel (0) target = $region49
    $region48: #{inverse_imaging_forward.1} parent=1 // pred_region
      _
    $region49: #{inverse_imaging_forward.1} parent=1 // pred_fallthru
      _
    %1099 = vsyncpa [#allocation3], 1

</llo_original>
